<compile_context>
chip_gen: v5e
topology: v5e:2x2
jax: 0.10.0
libtpu: 0.0.40
codegen_flags: <defaults>
</compile_context>

<pallas_src>
import functools

import jax
import jax.numpy as jnp
from jax.experimental import pallas as pl
from jax.experimental.pallas import tpu as pltpu


def _rope_cache_kernel_packed(freq_ref, cos_ref, sin_ref, *, pos_per_row,
                              tile_rows, shift):
    """Lane-packed layout: each 128-lane row holds `pos_per_row` consecutive
    positions, each spanning `dim` lanes.  freq_ref ([1, 128], f32) is the
    per-lane inv_freq pattern already replicated to match concat(freqs, freqs)."""
    i = pl.program_id(0)
    shape = (tile_rows, 128)
    row = jax.lax.broadcasted_iota(jnp.int32, shape, 0) + i * tile_rows
    lane = jax.lax.broadcasted_iota(jnp.int32, shape, 1)
    pos = (row * pos_per_row + (lane >> shift)).astype(jnp.float32)  # exact ints
    ang = pos * freq_ref[...]                          # VPU; (1,128) bcasts rows
    cos_ref[...] = jnp.cos(ang).astype(cos_ref.dtype)  # EUP
    sin_ref[...] = jnp.sin(ang).astype(sin_ref.dtype)  # EUP


def _rope_cache_kernel_full(freq_ref, cos_ref, sin_ref, *, half, tile_rows,
                            use_half):
    """[rows, dim] layout.  freq_ref is [1, dim] (= concat(inv_freq, inv_freq))
    or, when half is lane-aligned (use_half), [1, half]: cos/sin are evaluated
    on half the lanes and each result is stored twice (concat symmetry)."""
    i = pl.program_id(0)
    width = freq_ref.shape[-1]
    shape = (tile_rows, width)
    pos = (jax.lax.broadcasted_iota(jnp.int32, shape, 0)
           + i * tile_rows).astype(jnp.float32)
    ang = pos * freq_ref[...]
    c = jnp.cos(ang).astype(cos_ref.dtype)
    s = jnp.sin(ang).astype(sin_ref.dtype)
    if use_half:
        cos_ref[:, pl.ds(0, half)] = c
        cos_ref[:, pl.ds(half, half)] = c
        sin_ref[:, pl.ds(0, half)] = s
        sin_ref[:, pl.ds(half, half)] = s
    else:
        cos_ref[...] = c
        sin_ref[...] = s


def _pick_row_tiling(n_rows, row_bytes, itemsize):
    """cdiv-based row tiling: <= ~2 MiB per output block (keeps the pipelined
    output writeback hidden), >= 4 grid steps when there is enough work
    (>= 2 per v7x TensorCore), dtype-aware sublane alignment."""
    sublane = {4: 8, 2: 16, 1: 32}.get(itemsize, 8)
    budget = 2 << 20
    tile_rows = max(sublane, budget // max(row_bytes, 1))
    if n_rows >= 4 * sublane:
        tile_rows = min(tile_rows, pl.cdiv(n_rows, 4))
    tile_rows = min(tile_rows, n_rows)
    if tile_rows < n_rows:
        # Partial final block is fine (OOB writes are dropped); full blocks
        # stay sublane-aligned for clean full-vreg vst.
        tile_rows = max(sublane, (tile_rows // sublane) * sublane)
    n_blocks = pl.cdiv(n_rows, tile_rows)
    return n_blocks, tile_rows


def llama_rotary_embedding(x, dim, max_position_embeddings=2048, base=10000.0):
    """Returns (cos_cached, sin_cached), shape [max_position_embeddings, dim],
    dtype == x.dtype -- matches LlamaRotaryEmbedding.forward."""
    assert dim % 2 == 0, "rotary dim must be even"
    out_dtype = x.dtype
    max_pos = max_position_embeddings
    half = dim // 2
    itemsize = jnp.dtype(out_dtype).itemsize

    # Exact inv_freq, same pow() expression as the PyTorch module.
    inv_freq = 1.0 / (base ** (jnp.arange(0, dim, 2, dtype=jnp.float32) / dim))

    pack = dim < 128 and 128 % dim == 0 and max_pos % (128 // dim) == 0
    if pack:
        pos_per_row = 128 // dim
        shift = int(dim).bit_length() - 1          # log2(dim); dim is a pow of 2
        n_rows = max_pos // pos_per_row
        out_width = 128
        # Per-lane inv_freq pattern: 128 lanes hold pos_per_row copies of
        # concat(inv_freq, inv_freq)  ->  lane l maps to inv_freq[l % half].
        freq_lane = inv_freq[jnp.arange(128) % half].reshape(1, 128)
        n_blocks, tile_rows = _pick_row_tiling(n_rows, out_width * itemsize,
                                               itemsize)
        kernel = functools.partial(
            _rope_cache_kernel_packed, pos_per_row=pos_per_row,
            tile_rows=tile_rows, shift=shift)
        out_struct = jax.ShapeDtypeStruct((n_rows, 128), out_dtype)
        out_spec = pl.BlockSpec((tile_rows, 128), lambda i: (i, 0))
    else:
        n_rows = max_pos
        out_width = dim
        use_half = half % 128 == 0
        if use_half:
            freq_lane = inv_freq.reshape(1, half)
        else:
            freq_lane = jnp.concatenate([inv_freq, inv_freq]).reshape(1, dim)
        n_blocks, tile_rows = _pick_row_tiling(n_rows, out_width * itemsize,
                                               itemsize)
        kernel = functools.partial(
            _rope_cache_kernel_full, half=half, tile_rows=tile_rows,
            use_half=use_half)
        out_struct = jax.ShapeDtypeStruct((max_pos, dim), out_dtype)
        out_spec = pl.BlockSpec((tile_rows, dim), lambda i: (i, 0))

    in_width = int(freq_lane.shape[-1])
    freq_spec = pl.BlockSpec((1, in_width), lambda i: (0, 0))   # resident input

    # VMEM need: 2 outputs x 2 pipeline buffers x tile + resident input + margin.
    tile_bytes = tile_rows * out_width * itemsize
    vmem_need = 4 * tile_bytes + 2 * in_width * 4 + (4 << 20)
    vmem_limit = int(min(max(vmem_need, 8 << 20), 64 << 20))

    cos_cached, sin_cached = pl.pallas_call(
        kernel,
        out_shape=(out_struct, out_struct),
        grid_spec=pltpu.PrefetchScalarGridSpec(
            num_scalar_prefetch=0,
            grid=(n_blocks,),
            in_specs=[freq_spec],
            out_specs=[out_spec, out_spec],
        ),
        compiler_params=pltpu.CompilerParams(
            dimension_semantics=("parallel",),   # rows split across v7x's 2 TCs
            vmem_limit_bytes=vmem_limit,
        ),
    )(freq_lane)

    if pack:
        # Row-major: packed[r, l] is flat element r*128 + l == pos*dim + d,
        # so this reshape is a contiguous (free) view back to [max_pos, dim].
        cos_cached = cos_cached.reshape(max_pos, dim)
        sin_cached = sin_cached.reshape(max_pos, dim)
    return cos_cached, sin_cached


def _reference(dim, max_pos, base, dtype):
    inv_freq = 1.0 / (base ** (jnp.arange(0, dim, 2, dtype=jnp.float32) / dim))
    t = jnp.arange(max_pos, dtype=jnp.float32)
    freqs = jnp.outer(t, inv_freq)
    emb = jnp.concatenate([freqs, freqs], axis=-1)
    return jnp.cos(emb).astype(dtype), jnp.sin(emb).astype(dtype)


if __name__ == "__main__":
    key = jax.random.PRNGKey(0)
    # inv_freq now bit-matches the reference pow() path; remaining difference
    # is only the cos/sin approximation between Mosaic and XLA lowerings, so a
    # tight tolerance still holds (layout bugs would show O(0.1..2) errors).
    tol = 1e-3

    # 1) Small shapes: head_dim=32 (lane-packed path), max_pos=256.
    #    x only supplies the output dtype, as in the PyTorch module.
    dim, max_pos = 32, 256
    x = jax.random.normal(key, (2, 8, dim), dtype=jnp.float32)
    cos, sin = llama_rotary_embedding(x, dim=dim, max_position_embeddings=max_pos)
    cos, sin = jax.block_until_ready(cos), jax.block_until_ready(sin)
    ref_cos, ref_sin = _reference(dim, max_pos, 10000.0, x.dtype)
    assert cos.shape == (max_pos, dim) and sin.shape == (max_pos, dim)
    assert cos.dtype == x.dtype and sin.dtype == x.dtype
    assert jnp.allclose(cos, ref_cos, atol=tol, rtol=tol)
    assert jnp.allclose(sin, ref_sin, atol=tol, rtol=tol)

    # 2) Typical LLaMA head_dim=128 (full-width path), small seq.
    dim, max_pos = 128, 64
    x2 = jax.random.normal(key, (2, 4, dim), dtype=jnp.float32)
    cos, sin = llama_rotary_embedding(x2, dim=dim, max_position_embeddings=max_pos)
    cos, sin = jax.block_until_ready(cos), jax.block_until_ready(sin)
    ref_cos, ref_sin = _reference(dim, max_pos, 10000.0, x2.dtype)
    assert jnp.allclose(cos, ref_cos, atol=tol, rtol=tol)
    assert jnp.allclose(sin, ref_sin, atol=tol, rtol=tol)

    # 3) dim=256 exercises the half-width (concat-symmetry) store path, bf16 out.
    dim, max_pos = 256, 32
    x3 = jax.random.normal(key, (2, 2, dim), dtype=jnp.bfloat16)
    cos, sin = llama_rotary_embedding(x3, dim=dim, max_position_embeddings=max_pos)
    cos, sin = jax.block_until_ready(cos), jax.block_until_ready(sin)
    ref_cos, ref_sin = _reference(dim, max_pos, 10000.0, x3.dtype)
    assert cos.dtype == jnp.bfloat16 and sin.dtype == jnp.bfloat16
    assert jnp.allclose(cos.astype(jnp.float32), ref_cos.astype(jnp.float32),
                        atol=1e-2, rtol=1e-2)
    assert jnp.allclose(sin.astype(jnp.float32), ref_sin.astype(jnp.float32),
                        atol=1e-2, rtol=1e-2)

    print("KERNEL_OK")
</pallas_src>

<mosaic_0001>
module attributes {stable_mosaic.version = 11 : i64} {
  func.func @_rope_cache_kernel_packed(%arg0: i32, %arg1: memref<1x128xf32, #tpu.memory_space<vmem>>, %arg2: memref<16x128xf32, #tpu.memory_space<vmem>>, %arg3: memref<16x128xf32, #tpu.memory_space<vmem>>) attributes {dimension_semantics = [#tpu.dimension_semantics<parallel>], iteration_bounds = array<i64: 4>, scalar_prefetch = 0 : i64, scratch_operands = 0 : i64, tpu.core_type = #tpu.core_type<tc>, window_params = [{pipeline_mode = #tpu.pipeline_mode<synchronous>, transform_indices = @transform_0, window_bounds = array<i64: 1, 128>}, {transform_indices = @transform_1, window_bounds = array<i64: 16, 128>}, {transform_indices = @transform_2, window_bounds = array<i64: 16, 128>}]} {
    %0 = tpu.iota {dimensions = array<i32: 0>} : vector<16x128xi32>
    %c16_i32 = arith.constant 16 : i32
    %1 = arith.muli %arg0, %c16_i32 : i32
    %2 = vector.broadcast %1 : i32 to vector<16x128xi32>
    %3 = arith.addi %0, %2 : vector<16x128xi32>
    %4 = tpu.iota {dimensions = array<i32: 1>} : vector<16x128xi32>
    %c4_i32 = arith.constant 4 : i32
    %5 = vector.broadcast %c4_i32 : i32 to vector<16x128xi32>
    %6 = arith.muli %3, %5 : vector<16x128xi32>
    %c5_i32 = arith.constant 5 : i32
    %7 = vector.broadcast %c5_i32 : i32 to vector<16x128xi32>
    %8 = arith.shrsi %4, %7 : vector<16x128xi32>
    %9 = arith.addi %6, %8 : vector<16x128xi32>
    %10 = arith.sitofp %9 : vector<16x128xi32> to vector<16x128xf32>
    %c0 = arith.constant 0 : index
    %c0_0 = arith.constant 0 : index
    %11 = vector.load %arg1[%c0, %c0_0] : memref<1x128xf32, #tpu.memory_space<vmem>>, vector<1x128xf32>
    %12 = vector.broadcast %11 : vector<1x128xf32> to vector<16x128xf32>
    %13 = arith.mulf %10, %12 : vector<16x128xf32>
    %14 = math.cos %13 : vector<16x128xf32>
    %c0_1 = arith.constant 0 : index
    %c0_2 = arith.constant 0 : index
    %15 = vector.load %arg2[%c0_1, %c0_2] : memref<16x128xf32, #tpu.memory_space<vmem>>, vector<16x128xf32>
    tpu.vector_store %arg2[%c0_1, %c0_2], %14 {strides = array<i32>} : memref<16x128xf32, #tpu.memory_space<vmem>>, vector<16x128xf32>,
    %16 = math.sin %13 : vector<16x128xf32>
    %c0_3 = arith.constant 0 : index
    %c0_4 = arith.constant 0 : index
    %17 = vector.load %arg3[%c0_3, %c0_4] : memref<16x128xf32, #tpu.memory_space<vmem>>, vector<16x128xf32>
    tpu.vector_store %arg3[%c0_3, %c0_4], %16 {strides = array<i32>} : memref<16x128xf32, #tpu.memory_space<vmem>>, vector<16x128xf32>,
    return
  }
  func.func @transform_0(%arg0: i32) -> (i32, i32) {
    %c0_i32 = arith.constant 0 : i32
    %c0_i32_0 = arith.constant 0 : i32
    %c0_i32_1 = arith.constant 0 : i32
    return %c0_i32, %c0_i32_0 : i32, i32
  }
  func.func @transform_1(%arg0: i32) -> (i32, i32) {
    %c0_i32 = arith.constant 0 : i32
    %c0_i32_0 = arith.constant 0 : i32
    return %arg0, %c0_i32 : i32, i32
  }
  func.func @transform_2(%arg0: i32) -> (i32, i32) {
    %c0_i32 = arith.constant 0 : i32
    %c0_i32_0 = arith.constant 0 : i32
    return %arg0, %c0_i32 : i32, i32
  }
}

</mosaic_0001>

<llo_original>
// kernel: tpu_custom_call.1
$region0: #{tpu_custom_call.1}
  #allocation0 [shape = 'u32[]', space=smem, size = 0x4, offset = 0x4, fixed_abs, tag = 'smem constant byte address 0x4 - core index']
  #allocation1 [shape = 'u32[72,128]{1,0:T(1,128)}', space=vmem, size = 0x9000, scoped, tag = 'internal scratch']
  %s0 = inlined_call_operand.hbm [shape: f32[1,128], index: 0, kind: input, shape index: {}]
  %s1 = inlined_call_operand.hbm [shape: f32[64,128], index: 1, kind: output, shape index: {0}]
  %s2 = inlined_call_operand.hbm [shape: f32[64,128], index: 2, kind: output, shape index: {1}]
  %3 = xla_tuple %s1, %s2
  %s4 = sld [smem:[#allocation0]]
  $region49: #{tpu_custom_call.1} parent=0
    _
  %s6 = ssub.s32 1, %s4
  %s7 = scalar_select 0, %s6, %s4
  $region1: #{tpu_custom_call.1} parent=0
    #allocation2 [shape = 'u8[512]{0}', space=vmem, size = 0x400, scoped, tag = 'input window, operand 0, single buffered']
    #allocation3 [shape = 's32[2]{0}', space=sflag, size = 0x8, scoped, tag = 'scoped memory for tpu_custom_call.1']
    #allocation4 [shape = 's32[2]{0}', space=sflag, size = 0x8, scoped, tag = 'scoped memory for tpu_custom_call.1']
    #allocation5 [shape = 'u8[16384]{0}', space=vmem, size = 0x4000, scoped, tag = 'output window, operand 0']
    #allocation6 [shape = 'u8[16384]{0}', space=vmem, size = 0x4000, scoped, tag = 'output window, operand 1']
    #allocation7 [shape = 's32[2]{0}', space=sflag, size = 0x8, scoped, tag = 'scoped memory for tpu_custom_call.1']
    %8 = vsyncpa [#allocation3], 0
    %9 = vsyncpa [#allocation4], 0
    %s10 = scalar_lea.sflag [#allocation4], 1
    %11 = vsyncpa %s10, 0
    %12 = vsyncpa [#allocation7], 0
    %s13 = scalar_lea.sflag [#allocation7], 1
    %14 = vsyncpa %s13, 0
    loop: start=0, step=1, limit=6
    $region2: #{tpu_custom_call.1} parent=1 // loop_pre_header
      _
    $region3: #{tpu_custom_call.1} parent=1 // loop_header
      %s16 = sphi 0, %s20
      %p17 = scmp.ge.s32.totalorder %s16, 6
      %s24 = sphi 0, %s24
      %s26 = sphi 0, %s24
      %s27 = sphi 0, %s26
      %s41 = sphi 0, %s27
      %s47 = sphi 0, %s49
      %s50 = sphi 0, %s47
      %s51 = sphi 0, %s50
      %s67 = sphi 0, %s51
      %s73 = sphi 0, %s75
      %s76 = sphi 0, %s73
      %s77 = sphi 0, %s76
      %s93 = sphi 0, %s77
    $region4: #{tpu_custom_call.1} parent=1 // loop_header_branch
      %19 = sbr.rel (%p17) target = $region8
    $region5: #{tpu_custom_call.1} parent=1 // loop_body
      %s21 = ssub.s32 %s16, 1
      %s22 = ssub.s32 %s16, 2
      %s23 = sadd.s32 %s16, 1
      %s25 = sadd.s32 %s24, 1
      %p28 = scmp.eq.s32.totalorder %s16, 3
      %p29 = scmp.ne.s32.totalorder %s24, %s26
      %p30 = scmp.eq.s32.totalorder %s16, 0
      %p31 = por %p29, %p30
      %p32 = scmp.ne.s32.totalorder %s24, %s26
      %p33 = scmp.eq.s32.totalorder %s21, 3
      %p34 = por %p32, %p33
      %p35 = scmp.ne.s32.totalorder %s26, %s27
      %p36 = scmp.eq.s32.totalorder %s21, 0
      %p37 = por %p35, %p36
      %p38 = scmp.ne.s32.totalorder %s26, %s27
      %p39 = scmp.eq.s32.totalorder %s22, 3
      %p40 = por %p38, %p39
      %p42 = scmp.ne.s32.totalorder %s27, %s41
      %p43 = scmp.eq.s32.totalorder %s22, 0
      %p44 = por %p42, %p43
      %s45 = ssub.s32 %s16, %s23
      %p46 = scmp.eq.s32.totalorder %s45, 0
      %s48 = sadd.s32 %s47, 1
      %s49 = scalar_select %p46, %s47, %s48
      %p52 = pneg %p46
      %p53 = scmp.eq.s32.totalorder %s16, 3
      %p54 = por %p52, %p53
      %p55 = scmp.ne.s32.totalorder %s47, %s50
      %p56 = scmp.eq.s32.totalorder %s16, 0
      %p57 = por %p55, %p56
      %p58 = scmp.ne.s32.totalorder %s47, %s50
      %p59 = scmp.eq.s32.totalorder %s21, 3
      %p60 = por %p58, %p59
      %p61 = scmp.ne.s32.totalorder %s50, %s51
      %p62 = scmp.eq.s32.totalorder %s21, 0
      %p63 = por %p61, %p62
      %p64 = scmp.ne.s32.totalorder %s50, %s51
      %p65 = scmp.eq.s32.totalorder %s22, 3
      %p66 = por %p64, %p65
      %p68 = scmp.ne.s32.totalorder %s51, %s67
      %p69 = scmp.eq.s32.totalorder %s22, 0
      %p70 = por %p68, %p69
      %s71 = ssub.s32 %s16, %s23
      %p72 = scmp.eq.s32.totalorder %s71, 0
      %s74 = sadd.s32 %s73, 1
      %s75 = scalar_select %p72, %s73, %s74
      %p78 = pneg %p72
      %p79 = scmp.eq.s32.totalorder %s16, 3
      %p80 = por %p78, %p79
      %p81 = scmp.ne.s32.totalorder %s73, %s76
      %p82 = scmp.eq.s32.totalorder %s16, 0
      %p83 = por %p81, %p82
      %p84 = scmp.ne.s32.totalorder %s73, %s76
      %p85 = scmp.eq.s32.totalorder %s21, 3
      %p86 = por %p84, %p85
      %p87 = scmp.ne.s32.totalorder %s76, %s77
      %p88 = scmp.eq.s32.totalorder %s21, 0
      %p89 = por %p87, %p88
      %p90 = scmp.ne.s32.totalorder %s76, %s77
      %p91 = scmp.eq.s32.totalorder %s22, 3
      %p92 = por %p90, %p91
      %p94 = scmp.ne.s32.totalorder %s77, %s93
      %p95 = scmp.eq.s32.totalorder %s22, 0
      %p96 = por %p94, %p95
      %p97 = scmp.le.s32.totalorder 1, %s16
      %p98 = scmp.lt.s32.totalorder %s16, 5
      %p99 = pnand %p97, %p98
      %p100 = pneg %p99
      // Predicated region
      $region9: #{tpu_custom_call.1} parent=5 // pred_check
        _
      $region10: #{tpu_custom_call.1} parent=5 // pred_check_branch
        %102 = sbr.rel (%p99) target = $region12
      $region11: #{tpu_custom_call.1} parent=5 // pred_region
        %s103 = ssub.s32 %s16, 1
        // Predicated region
        $region13: #{tpu_custom_call.1} parent=11 // pred_check
          %p104 = pneg %p37
        $region14: #{tpu_custom_call.1} parent=11 // pred_check_branch
          %106 = sbr.rel (%p104) target = $region16
        $region15: #{tpu_custom_call.1} parent=11 // pred_region
          %108 = vsyncadd [#allocation3], 0
          %s110 = sshll.u32 %s0, 4
          %s111 = int_to_ptr.hbm [resolvable:$true] %s110
          %s112 = sshll.u32 [#allocation2], 4
          %s113 = int_to_ptr.vmem [resolvable:$true] %s112
          %115 = dma.hbm_to_vmem [thread:$0]  %s111, 16, %s113, [#allocation3]
        $region16: #{tpu_custom_call.1} parent=11 // pred_fallthru
          _
      $region12: #{tpu_custom_call.1} parent=5 // pred_fallthru
        _
      %p116 = scmp.lt.s32.totalorder %s16, 4
      // Predicated region
      $region17: #{tpu_custom_call.1} parent=5 // pred_check
        %p117 = pneg %p116
      $region18: #{tpu_custom_call.1} parent=5 // pred_check_branch
        %119 = sbr.rel (%p117) target = $region20
      $region19: #{tpu_custom_call.1} parent=5 // pred_region
        _
      $region20: #{tpu_custom_call.1} parent=5 // pred_fallthru
        _
      %p120 = scmp.le.s32.totalorder 1, %s16
      %p121 = scmp.lt.s32.totalorder %s16, 5
      %p122 = pnand %p120, %p121
      %p123 = pneg %p122
      // Predicated region
      $region21: #{tpu_custom_call.1} parent=5 // pred_check
        _
      $region22: #{tpu_custom_call.1} parent=5 // pred_check_branch
        %125 = sbr.rel (%p122) target = $region24
      $region23: #{tpu_custom_call.1} parent=5 // pred_region
        %s126 = ssub.s32 %s16, 1
        // Predicated region
        $region25: #{tpu_custom_call.1} parent=23 // pred_check
          %p127 = pneg %p37
        $region26: #{tpu_custom_call.1} parent=23 // pred_check_branch
          %129 = sbr.rel (%p127) target = $region28
        $region27: #{tpu_custom_call.1} parent=23 // pred_region
          %131 = dma.done [#allocation3], 16
        $region28: #{tpu_custom_call.1} parent=23 // pred_fallthru
          _
        %p132 = pneg %p37
        %p133 = pneg %p34
        %p134 = pneg %p63
        %p135 = pneg %p60
        %s136 = sand.u32 %s50, 1
        %s137 = scalar_lea.sflag [#allocation4], %s136
        %s138 = sand.u32 %s50, 1
        %s139 = smul.addr %s138, 16
        %s140 = scalar_lea.vmem [#allocation5], %s139
        %p141 = pneg %p89
        %p142 = pneg %p86
        %s143 = sand.u32 %s76, 1
        %s144 = scalar_lea.sflag [#allocation7], %s143
        %s145 = sand.u32 %s76, 1
        %s146 = smul.addr %s145, 16
        %s147 = scalar_lea.vmem [#allocation6], %s146
        %s148 = smul.u32 2, %s21
        %s149 = smul.u32 2, %s21
        %v150 = vlaneseq
        %v151 = vshrl.u32 %v150, 7
        %v152 = vadd.s32 %v151, 8
        %s153 = smul.u32 %s21, 16
        %v154 = vstv %s153
        %v155 = vadd.s32 %v151, %v154
        %v156 = vadd.s32 %v152, %v154
        %v157 = vlaneseq
        %v158 = vand.u32 %v157, 127
        %v159 = vmul.u32 %v155, 4
        %v160 = vmul.u32 %v156, 4
        %v161 = vshra.s32 %v158, 5
        %v162 = vadd.s32 %v159, %v161
        %v163 = vadd.s32 %v160, %v161
        %v164 = vcvt.s32.f32 %v162
        %v165 = vcvt.s32.f32 %v163
        %v166 = vld [vmem:[#allocation2] sm:$0x1]
        %v168 = vperm.slane %v166, 0
        %v170 = vmul.f32 %v164, %v168
        %v171 = vmul.f32 %v165, %v168
        %v172 = vand.u32 2147483647, %v170
        %vm173 = vcmp.le.f32.partialorder %v172, 0.7853982
        %vm174 = vcmp.lt.s32.totalorder %v170, 0
        %v175 = vand.u32 %v170, 2139095040
        %v176 = vshrl.u32 %v175, 23
        %v177 = vsub.s32 %v176, 127
        %v178 = vand.u32 2147483647, %v170
        %v179 = vand.u32 %v178, 8388607
        %v180 = vor.u32 %v179, 8388608
        %v181 = vsub.s32 0, %v180
        %v182 = vadd.s32 %v177, 1
        %vm183 = vcmp.gt.s32.totalorder %v182, 0
        %v184 = vsel %vm183, %v182, 0
        %v185 = vshrl.u32 %v184, 5
        %v186 = vand.u32 %v184, 31
        %v187 = vsub.s32 32, %v186
        %v188 = vshrl.u32 683565275, %v187
        %v189 = vshll.u32 683565275, %v186
        %v190 = vshrl.u32 2475754826, %v187
        %v191 = vor.u32 %v189, %v190
        %v192 = vshll.u32 2475754826, %v186
        %v193 = vshrl.u32 2131351028, %v187
        %v194 = vor.u32 %v192, %v193
        %v195 = vshll.u32 2131351028, %v186
        %v196 = vshrl.u32 2102212464, %v187
        %v197 = vor.u32 %v195, %v196
        %v198 = vshll.u32 2102212464, %v186
        %v199 = vshrl.u32 920167782, %v187
        %v200 = vor.u32 %v198, %v199
        %v201 = vshll.u32 920167782, %v186
        %v202 = vshrl.u32 1326507024, %v187
        %v203 = vor.u32 %v201, %v202
        %vm204 = vcmp.lt.s32.totalorder %v185, 1
        %vm205 = vcmp.lt.s32.totalorder %v185, 2
        %vm206 = vcmp.lt.s32.totalorder %v185, 3
        %vm207 = vcmp.lt.s32.totalorder %v185, 4
        %v208 = vsel %vm204, %v188, %v191
        %v209 = vsel %vm207, %v197, 2102212464
        %v210 = vsel %vm206, %v194, %v209
        %v211 = vsel %vm205, %v208, %v210
        %v212 = vsel %vm204, %v191, %v194
        %v213 = vsel %vm207, %v200, 920167782
        %v214 = vsel %vm206, %v197, %v213
        %v215 = vsel %vm205, %v212, %v214
        %v216 = vsel %vm204, %v194, %v197
        %v217 = vsel %vm207, %v203, 1326507024
        %v218 = vsel %vm206, %v200, %v217
        %v219 = vsel %vm205, %v216, %v218
        %v220 = vshll.u32 %v180, 8
        %v221 = vand.u32 %v220, 65535
        %v222 = vshrl.u32 %v220, 16
        %v223 = vand.u32 %v219, 65535
        %v224 = vshrl.u32 %v219, 16
        %v225 = vmul.u32 %v221, %v223
        %v226 = vmul.u32 %v221, %v224
        %v227 = vmul.u32 %v222, %v223
        %v228 = vmul.u32 %v222, %v224
        %v229 = vshll.u32 %v226, 16
        %v230 = vshrl.u32 %v226, 16
        %v231 = vshll.u32 %v227, 16
        %v232 = vshrl.u32 %v227, 16
        %vm233 = vc.u32 %v225, %v229
        %v234 = vsel %vm233, 1, 0
        %v235 = vadd.s32 %v225, %v229
        %v236 = vadd.s32 %v228, %v234
        %vm237 = vc.u32 %v235, %v231
        %v238 = vsel %vm237, 1, 0
        %v239 = vadd.s32 %v235, %v231
        %v240 = vadd.s32 %v236, %v238
        %v241 = vadd.s32 %v240, %v230
        %v242 = vadd.s32 %v241, %v232
        %v243 = vand.u32 %v220, 65535
        %v244 = vshrl.u32 %v220, 16
        %v245 = vand.u32 %v215, 65535
        %v246 = vshrl.u32 %v215, 16
        %v247 = vmul.u32 %v243, %v245
        %v248 = vmul.u32 %v243, %v246
        %v249 = vmul.u32 %v244, %v245
        %v250 = vmul.u32 %v244, %v246
        %v251 = vshll.u32 %v248, 16
        %v252 = vshrl.u32 %v248, 16
        %v253 = vshll.u32 %v249, 16
        %v254 = vshrl.u32 %v249, 16
        %vm255 = vc.u32 %v247, %v251
        %v256 = vsel %vm255, 1, 0
        %v257 = vadd.s32 %v247, %v251
        %v258 = vadd.s32 %v250, %v256
        %vm259 = vc.u32 %v257, %v253
        %v260 = vsel %vm259, 1, 0
        %v261 = vadd.s32 %v257, %v253
        %v262 = vadd.s32 %v258, %v260
        %v263 = vadd.s32 %v262, %v252
        %v264 = vadd.s32 %v263, %v254
        %v265 = vmul.u32 %v220, %v211
        %v266 = vadd.s32 %v242, %v261
        %vm267 = vc.u32 %v242, %v261
        %v268 = vadd.s32 %v264, 1
        %v269 = vsel %vm267, %v268, %v264
        %v270 = vadd.s32 %v265, %v269
        %v271 = vadd.s32 %v270, 536870912
        %v272 = vshrl.u32 %v271, 30
        %v273 = vshll.u32 %v272, 30
        %v274 = vsub.s32 %v270, %v273
        %vm275 = vcmp.lt.s32.totalorder %v274, 0
        %v276 = vsub.s32 0, %v274
        %v277 = vsel %vm275, %v276, %v274
        %v278 = vclz %v277
        %v279 = vsub.s32 %v278, 2
        %vm280 = vcmp.gt.s32.totalorder 0, %v279
        %v281 = vsel %vm280, 0, %v279
        %v282 = vsub.s32 32, %v281
        %v283 = vshll.u32 %v274, %v281
        %v284 = vshrl.u32 %v266, %v282
        %v285 = vor.u32 %v283, %v284
        %v286 = vsub.s32 4294967266, %v281
        %v287 = vadd.s32 %v286, 127
        %v288 = vshll.u32 %v287, 23
        %v289 = vor.u32 4788187, %v288
        %v290 = vand.u32 2147483647, %v289
        %v292 = vcvt.s32.f32 %v285
        %v293 = vmul.f32 %v292, %v290
        %v294 = vxor.u32 %v293, 2147483648
        %v295 = vsel %vm174, %v294, %v293
        %v296 = vsub.s32 4, %v272
        %v297 = vsel %vm174, %v296, %v272
        %v298 = vsel %vm173, %v170, %v295
        %v299 = vsel %vm173, 0, %v297
        %v300 = vmul.f32 %v298, %v298
        %v301 = vmul.f32 %v300, -0.001358992
        %v302 = vadd.f32 %v301, 0.041655596
        %v303 = vmul.f32 %v300, %v302
        %v304 = vadd.f32 %v303, -0.4999988
        %v305 = vmul.f32 %v300, %v304
        %v306 = vadd.f32 1.0, %v305
        %v307 = vmul.f32 %v298, %v298
        %v308 = vmul.f32 %v307, -0.00019511016
        %v309 = vadd.f32 %v308, 0.008332121
        %v310 = vmul.f32 %v307, %v309
        %v311 = vadd.f32 %v310, -0.16666654
        %v312 = vmul.f32 %v307, %v311
        %v313 = vadd.f32 %v312, 1.0
        %v314 = vmul.f32 %v313, %v298
        %vm315 = vweird.f32 %v170
        %v316 = vand.u32 %v299, 3
        %vm317 = vcmp.lt.s32.totalorder %v316, 2
        %vm318 = vcmp.eq.s32.totalorder %v316, 0
        %v319 = vxor.u32 %v314, 2147483648
        %v320 = vsel %vm318, %v306, %v319
        %vm321 = vcmp.eq.s32.totalorder %v316, 2
        %v322 = vxor.u32 %v306, 2147483648
        %v323 = vsel %vm321, %v322, %v314
        %v324 = vsel %vm317, %v320, %v323
        %v325 = vsel %vm315, nan, %v324
        %v326 = vand.u32 2147483647, %v171
        %vm327 = vcmp.le.f32.partialorder %v326, 0.7853982
        %vm328 = vcmp.lt.s32.totalorder %v171, 0
        %v329 = vand.u32 %v171, 2139095040
        %v330 = vshrl.u32 %v329, 23
        %v331 = vsub.s32 %v330, 127
        %v332 = vand.u32 2147483647, %v171
        %v333 = vand.u32 %v332, 8388607
        %v334 = vor.u32 %v333, 8388608
        %v335 = vsub.s32 0, %v334
        %v336 = vadd.s32 %v331, 1
        %vm337 = vcmp.gt.s32.totalorder %v336, 0
        %v338 = vsel %vm337, %v336, 0
        %v339 = vshrl.u32 %v338, 5
        %v340 = vand.u32 %v338, 31
        %v341 = vsub.s32 32, %v340
        %v342 = vshrl.u32 683565275, %v341
        %v343 = vshll.u32 683565275, %v340
        %v344 = vshrl.u32 2475754826, %v341
        %v345 = vor.u32 %v343, %v344
        %v346 = vshll.u32 2475754826, %v340
        %v347 = vshrl.u32 2131351028, %v341
        %v348 = vor.u32 %v346, %v347
        %v349 = vshll.u32 2131351028, %v340
        %v350 = vshrl.u32 2102212464, %v341
        %v351 = vor.u32 %v349, %v350
        %v352 = vshll.u32 2102212464, %v340
        %v353 = vshrl.u32 920167782, %v341
        %v354 = vor.u32 %v352, %v353
        %v355 = vshll.u32 920167782, %v340
        %v356 = vshrl.u32 1326507024, %v341
        %v357 = vor.u32 %v355, %v356
        %vm358 = vcmp.lt.s32.totalorder %v339, 1
        %vm359 = vcmp.lt.s32.totalorder %v339, 2
        %vm360 = vcmp.lt.s32.totalorder %v339, 3
        %vm361 = vcmp.lt.s32.totalorder %v339, 4
        %v362 = vsel %vm358, %v342, %v345
        %v363 = vsel %vm361, %v351, 2102212464
        %v364 = vsel %vm360, %v348, %v363
        %v365 = vsel %vm359, %v362, %v364
        %v366 = vsel %vm358, %v345, %v348
        %v367 = vsel %vm361, %v354, 920167782
        %v368 = vsel %vm360, %v351, %v367
        %v369 = vsel %vm359, %v366, %v368
        %v370 = vsel %vm358, %v348, %v351
        %v371 = vsel %vm361, %v357, 1326507024
        %v372 = vsel %vm360, %v354, %v371
        %v373 = vsel %vm359, %v370, %v372
        %v374 = vshll.u32 %v334, 8
        %v375 = vand.u32 %v374, 65535
        %v376 = vshrl.u32 %v374, 16
        %v377 = vand.u32 %v373, 65535
        %v378 = vshrl.u32 %v373, 16
        %v379 = vmul.u32 %v375, %v377
        %v380 = vmul.u32 %v375, %v378
        %v381 = vmul.u32 %v376, %v377
        %v382 = vmul.u32 %v376, %v378
        %v383 = vshll.u32 %v380, 16
        %v384 = vshrl.u32 %v380, 16
        %v385 = vshll.u32 %v381, 16
        %v386 = vshrl.u32 %v381, 16
        %vm387 = vc.u32 %v379, %v383
        %v388 = vsel %vm387, 1, 0
        %v389 = vadd.s32 %v379, %v383
        %v390 = vadd.s32 %v382, %v388
        %vm391 = vc.u32 %v389, %v385
        %v392 = vsel %vm391, 1, 0
        %v393 = vadd.s32 %v389, %v385
        %v394 = vadd.s32 %v390, %v392
        %v395 = vadd.s32 %v394, %v384
        %v396 = vadd.s32 %v395, %v386
        %v397 = vand.u32 %v374, 65535
        %v398 = vshrl.u32 %v374, 16
        %v399 = vand.u32 %v369, 65535
        %v400 = vshrl.u32 %v369, 16
        %v401 = vmul.u32 %v397, %v399
        %v402 = vmul.u32 %v397, %v400
        %v403 = vmul.u32 %v398, %v399
        %v404 = vmul.u32 %v398, %v400
        %v405 = vshll.u32 %v402, 16
        %v406 = vshrl.u32 %v402, 16
        %v407 = vshll.u32 %v403, 16
        %v408 = vshrl.u32 %v403, 16
        %vm409 = vc.u32 %v401, %v405
        %v410 = vsel %vm409, 1, 0
        %v411 = vadd.s32 %v401, %v405
        %v412 = vadd.s32 %v404, %v410
        %vm413 = vc.u32 %v411, %v407
        %v414 = vsel %vm413, 1, 0
        %v415 = vadd.s32 %v411, %v407
        %v416 = vadd.s32 %v412, %v414
        %v417 = vadd.s32 %v416, %v406
        %v418 = vadd.s32 %v417, %v408
        %v419 = vmul.u32 %v374, %v365
        %v420 = vadd.s32 %v396, %v415
        %vm421 = vc.u32 %v396, %v415
        %v422 = vadd.s32 %v418, 1
        %v423 = vsel %vm421, %v422, %v418
        %v424 = vadd.s32 %v419, %v423
        %v425 = vadd.s32 %v424, 536870912
        %v426 = vshrl.u32 %v425, 30
        %v427 = vshll.u32 %v426, 30
        %v428 = vsub.s32 %v424, %v427
        %vm429 = vcmp.lt.s32.totalorder %v428, 0
        %v430 = vsub.s32 0, %v428
        %v431 = vsel %vm429, %v430, %v428
        %v432 = vclz %v431
        %v433 = vsub.s32 %v432, 2
        %vm434 = vcmp.gt.s32.totalorder 0, %v433
        %v435 = vsel %vm434, 0, %v433
        %v436 = vsub.s32 32, %v435
        %v437 = vshll.u32 %v428, %v435
        %v438 = vshrl.u32 %v420, %v436
        %v439 = vor.u32 %v437, %v438
        %v440 = vsub.s32 4294967266, %v435
        %v441 = vadd.s32 %v440, 127
        %v442 = vshll.u32 %v441, 23
        %v443 = vor.u32 4788187, %v442
        %v444 = vand.u32 2147483647, %v443
        %v446 = vcvt.s32.f32 %v439
        %v447 = vmul.f32 %v446, %v444
        %v448 = vxor.u32 %v447, 2147483648
        %v449 = vsel %vm328, %v448, %v447
        %v450 = vsub.s32 4, %v426
        %v451 = vsel %vm328, %v450, %v426
        %v452 = vsel %vm327, %v171, %v449
        %v453 = vsel %vm327, 0, %v451
        %v454 = vmul.f32 %v452, %v452
        %v455 = vmul.f32 %v454, -0.001358992
        %v456 = vadd.f32 %v455, 0.041655596
        %v457 = vmul.f32 %v454, %v456
        %v458 = vadd.f32 %v457, -0.4999988
        %v459 = vmul.f32 %v454, %v458
        %v460 = vadd.f32 1.0, %v459
        %v461 = vmul.f32 %v452, %v452
        %v462 = vmul.f32 %v461, -0.00019511016
        %v463 = vadd.f32 %v462, 0.008332121
        %v464 = vmul.f32 %v461, %v463
        %v465 = vadd.f32 %v464, -0.16666654
        %v466 = vmul.f32 %v461, %v465
        %v467 = vadd.f32 %v466, 1.0
        %v468 = vmul.f32 %v467, %v452
        %vm469 = vweird.f32 %v171
        %v470 = vand.u32 %v453, 3
        %vm471 = vcmp.lt.s32.totalorder %v470, 2
        %vm472 = vcmp.eq.s32.totalorder %v470, 0
        %v473 = vxor.u32 %v468, 2147483648
        %v474 = vsel %vm472, %v460, %v473
        %vm475 = vcmp.eq.s32.totalorder %v470, 2
        %v476 = vxor.u32 %v460, 2147483648
        %v477 = vsel %vm475, %v476, %v468
        %v478 = vsel %vm471, %v474, %v477
        %v479 = vsel %vm469, nan, %v478
        %480 = vst [vmem:[%s140] sm:$0xff] %v325
        %481 = vst [vmem:[%s140 + $0x8] sm:$0xff] %v479
        %v482 = vand.u32 2147483647, %v170
        %vm483 = vcmp.le.f32.partialorder %v482, 0.7853982
        %vm484 = vcmp.lt.s32.totalorder %v170, 0
        %v485 = vand.u32 %v170, 2139095040
        %v486 = vshrl.u32 %v485, 23
        %v487 = vsub.s32 %v486, 127
        %v488 = vand.u32 2147483647, %v170
        %v489 = vand.u32 %v488, 8388607
        %v490 = vor.u32 %v489, 8388608
        %v491 = vsub.s32 0, %v490
        %v492 = vadd.s32 %v487, 1
        %vm493 = vcmp.gt.s32.totalorder %v492, 0
        %v494 = vsel %vm493, %v492, 0
        %v495 = vshrl.u32 %v494, 5
        %v496 = vand.u32 %v494, 31
        %v497 = vsub.s32 32, %v496
        %v498 = vshrl.u32 683565275, %v497
        %v499 = vshll.u32 683565275, %v496
        %v500 = vshrl.u32 2475754826, %v497
        %v501 = vor.u32 %v499, %v500
        %v502 = vshll.u32 2475754826, %v496
        %v503 = vshrl.u32 2131351028, %v497
        %v504 = vor.u32 %v502, %v503
        %v505 = vshll.u32 2131351028, %v496
        %v506 = vshrl.u32 2102212464, %v497
        %v507 = vor.u32 %v505, %v506
        %v508 = vshll.u32 2102212464, %v496
        %v509 = vshrl.u32 920167782, %v497
        %v510 = vor.u32 %v508, %v509
        %v511 = vshll.u32 920167782, %v496
        %v512 = vshrl.u32 1326507024, %v497
        %v513 = vor.u32 %v511, %v512
        %vm514 = vcmp.lt.s32.totalorder %v495, 1
        %vm515 = vcmp.lt.s32.totalorder %v495, 2
        %vm516 = vcmp.lt.s32.totalorder %v495, 3
        %vm517 = vcmp.lt.s32.totalorder %v495, 4
        %v518 = vsel %vm514, %v498, %v501
        %v519 = vsel %vm517, %v507, 2102212464
        %v520 = vsel %vm516, %v504, %v519
        %v521 = vsel %vm515, %v518, %v520
        %v522 = vsel %vm514, %v501, %v504
        %v523 = vsel %vm517, %v510, 920167782
        %v524 = vsel %vm516, %v507, %v523
        %v525 = vsel %vm515, %v522, %v524
        %v526 = vsel %vm514, %v504, %v507
        %v527 = vsel %vm517, %v513, 1326507024
        %v528 = vsel %vm516, %v510, %v527
        %v529 = vsel %vm515, %v526, %v528
        %v530 = vshll.u32 %v490, 8
        %v531 = vand.u32 %v530, 65535
        %v532 = vshrl.u32 %v530, 16
        %v533 = vand.u32 %v529, 65535
        %v534 = vshrl.u32 %v529, 16
        %v535 = vmul.u32 %v531, %v533
        %v536 = vmul.u32 %v531, %v534
        %v537 = vmul.u32 %v532, %v533
        %v538 = vmul.u32 %v532, %v534
        %v539 = vshll.u32 %v536, 16
        %v540 = vshrl.u32 %v536, 16
        %v541 = vshll.u32 %v537, 16
        %v542 = vshrl.u32 %v537, 16
        %vm543 = vc.u32 %v535, %v539
        %v544 = vsel %vm543, 1, 0
        %v545 = vadd.s32 %v535, %v539
        %v546 = vadd.s32 %v538, %v544
        %vm547 = vc.u32 %v545, %v541
        %v548 = vsel %vm547, 1, 0
        %v549 = vadd.s32 %v545, %v541
        %v550 = vadd.s32 %v546, %v548
        %v551 = vadd.s32 %v550, %v540
        %v552 = vadd.s32 %v551, %v542
        %v553 = vand.u32 %v530, 65535
        %v554 = vshrl.u32 %v530, 16
        %v555 = vand.u32 %v525, 65535
        %v556 = vshrl.u32 %v525, 16
        %v557 = vmul.u32 %v553, %v555
        %v558 = vmul.u32 %v553, %v556
        %v559 = vmul.u32 %v554, %v555
        %v560 = vmul.u32 %v554, %v556
        %v561 = vshll.u32 %v558, 16
        %v562 = vshrl.u32 %v558, 16
        %v563 = vshll.u32 %v559, 16
        %v564 = vshrl.u32 %v559, 16
        %vm565 = vc.u32 %v557, %v561
        %v566 = vsel %vm565, 1, 0
        %v567 = vadd.s32 %v557, %v561
        %v568 = vadd.s32 %v560, %v566
        %vm569 = vc.u32 %v567, %v563
        %v570 = vsel %vm569, 1, 0
        %v571 = vadd.s32 %v567, %v563
        %v572 = vadd.s32 %v568, %v570
        %v573 = vadd.s32 %v572, %v562
        %v574 = vadd.s32 %v573, %v564
        %v575 = vmul.u32 %v530, %v521
        %v576 = vadd.s32 %v552, %v571
        %vm577 = vc.u32 %v552, %v571
        %v578 = vadd.s32 %v574, 1
        %v579 = vsel %vm577, %v578, %v574
        %v580 = vadd.s32 %v575, %v579
        %v581 = vadd.s32 %v580, 536870912
        %v582 = vshrl.u32 %v581, 30
        %v583 = vshll.u32 %v582, 30
        %v584 = vsub.s32 %v580, %v583
        %vm585 = vcmp.lt.s32.totalorder %v584, 0
        %v586 = vsub.s32 0, %v584
        %v587 = vsel %vm585, %v586, %v584
        %v588 = vclz %v587
        %v589 = vsub.s32 %v588, 2
        %vm590 = vcmp.gt.s32.totalorder 0, %v589
        %v591 = vsel %vm590, 0, %v589
        %v592 = vsub.s32 32, %v591
        %v593 = vshll.u32 %v584, %v591
        %v594 = vshrl.u32 %v576, %v592
        %v595 = vor.u32 %v593, %v594
        %v596 = vsub.s32 4294967266, %v591
        %v597 = vadd.s32 %v596, 127
        %v598 = vshll.u32 %v597, 23
        %v599 = vor.u32 4788187, %v598
        %v600 = vand.u32 2147483647, %v599
        %v602 = vcvt.s32.f32 %v595
        %v603 = vmul.f32 %v602, %v600
        %v604 = vxor.u32 %v603, 2147483648
        %v605 = vsel %vm484, %v604, %v603
        %v606 = vsub.s32 4, %v582
        %v607 = vsel %vm484, %v606, %v582
        %v608 = vsel %vm483, %v170, %v605
        %v609 = vsel %vm483, 0, %v607
        %v610 = vmul.f32 %v608, %v608
        %v611 = vmul.f32 %v610, -0.001358992
        %v612 = vadd.f32 %v611, 0.041655596
        %v613 = vmul.f32 %v610, %v612
        %v614 = vadd.f32 %v613, -0.4999988
        %v615 = vmul.f32 %v610, %v614
        %v616 = vadd.f32 1.0, %v615
        %v617 = vmul.f32 %v608, %v608
        %v618 = vmul.f32 %v617, -0.00019511016
        %v619 = vadd.f32 %v618, 0.008332121
        %v620 = vmul.f32 %v617, %v619
        %v621 = vadd.f32 %v620, -0.16666654
        %v622 = vmul.f32 %v617, %v621
        %v623 = vadd.f32 %v622, 1.0
        %v624 = vmul.f32 %v623, %v608
        %vm625 = vweird.f32 %v170
        %v626 = vadd.s32 %v609, 3
        %v627 = vand.u32 %v626, 3
        %vm628 = vcmp.lt.s32.totalorder %v627, 2
        %vm629 = vcmp.eq.s32.totalorder %v627, 0
        %v630 = vxor.u32 %v624, 2147483648
        %v631 = vsel %vm629, %v616, %v630
        %vm632 = vcmp.eq.s32.totalorder %v627, 2
        %v633 = vxor.u32 %v616, 2147483648
        %v634 = vsel %vm632, %v633, %v624
        %v635 = vsel %vm628, %v631, %v634
        %v636 = vsel %vm625, nan, %v635
        %v637 = vand.u32 2147483647, %v171
        %vm638 = vcmp.le.f32.partialorder %v637, 0.7853982
        %vm639 = vcmp.lt.s32.totalorder %v171, 0
        %v640 = vand.u32 %v171, 2139095040
        %v641 = vshrl.u32 %v640, 23
        %v642 = vsub.s32 %v641, 127
        %v643 = vand.u32 2147483647, %v171
        %v644 = vand.u32 %v643, 8388607
        %v645 = vor.u32 %v644, 8388608
        %v646 = vsub.s32 0, %v645
        %v647 = vadd.s32 %v642, 1
        %vm648 = vcmp.gt.s32.totalorder %v647, 0
        %v649 = vsel %vm648, %v647, 0
        %v650 = vshrl.u32 %v649, 5
        %v651 = vand.u32 %v649, 31
        %v652 = vsub.s32 32, %v651
        %v653 = vshrl.u32 683565275, %v652
        %v654 = vshll.u32 683565275, %v651
        %v655 = vshrl.u32 2475754826, %v652
        %v656 = vor.u32 %v654, %v655
        %v657 = vshll.u32 2475754826, %v651
        %v658 = vshrl.u32 2131351028, %v652
        %v659 = vor.u32 %v657, %v658
        %v660 = vshll.u32 2131351028, %v651
        %v661 = vshrl.u32 2102212464, %v652
        %v662 = vor.u32 %v660, %v661
        %v663 = vshll.u32 2102212464, %v651
        %v664 = vshrl.u32 920167782, %v652
        %v665 = vor.u32 %v663, %v664
        %v666 = vshll.u32 920167782, %v651
        %v667 = vshrl.u32 1326507024, %v652
        %v668 = vor.u32 %v666, %v667
        %vm669 = vcmp.lt.s32.totalorder %v650, 1
        %vm670 = vcmp.lt.s32.totalorder %v650, 2
        %vm671 = vcmp.lt.s32.totalorder %v650, 3
        %vm672 = vcmp.lt.s32.totalorder %v650, 4
        %v673 = vsel %vm669, %v653, %v656
        %v674 = vsel %vm672, %v662, 2102212464
        %v675 = vsel %vm671, %v659, %v674
        %v676 = vsel %vm670, %v673, %v675
        %v677 = vsel %vm669, %v656, %v659
        %v678 = vsel %vm672, %v665, 920167782
        %v679 = vsel %vm671, %v662, %v678
        %v680 = vsel %vm670, %v677, %v679
        %v681 = vsel %vm669, %v659, %v662
        %v682 = vsel %vm672, %v668, 1326507024
        %v683 = vsel %vm671, %v665, %v682
        %v684 = vsel %vm670, %v681, %v683
        %v685 = vshll.u32 %v645, 8
        %v686 = vand.u32 %v685, 65535
        %v687 = vshrl.u32 %v685, 16
        %v688 = vand.u32 %v684, 65535
        %v689 = vshrl.u32 %v684, 16
        %v690 = vmul.u32 %v686, %v688
        %v691 = vmul.u32 %v686, %v689
        %v692 = vmul.u32 %v687, %v688
        %v693 = vmul.u32 %v687, %v689
        %v694 = vshll.u32 %v691, 16
        %v695 = vshrl.u32 %v691, 16
        %v696 = vshll.u32 %v692, 16
        %v697 = vshrl.u32 %v692, 16
        %vm698 = vc.u32 %v690, %v694
        %v699 = vsel %vm698, 1, 0
        %v700 = vadd.s32 %v690, %v694
        %v701 = vadd.s32 %v693, %v699
        %vm702 = vc.u32 %v700, %v696
        %v703 = vsel %vm702, 1, 0
        %v704 = vadd.s32 %v700, %v696
        %v705 = vadd.s32 %v701, %v703
        %v706 = vadd.s32 %v705, %v695
        %v707 = vadd.s32 %v706, %v697
        %v708 = vand.u32 %v685, 65535
        %v709 = vshrl.u32 %v685, 16
        %v710 = vand.u32 %v680, 65535
        %v711 = vshrl.u32 %v680, 16
        %v712 = vmul.u32 %v708, %v710
        %v713 = vmul.u32 %v708, %v711
        %v714 = vmul.u32 %v709, %v710
        %v715 = vmul.u32 %v709, %v711
        %v716 = vshll.u32 %v713, 16
        %v717 = vshrl.u32 %v713, 16
        %v718 = vshll.u32 %v714, 16
        %v719 = vshrl.u32 %v714, 16
        %vm720 = vc.u32 %v712, %v716
        %v721 = vsel %vm720, 1, 0
        %v722 = vadd.s32 %v712, %v716
        %v723 = vadd.s32 %v715, %v721
        %vm724 = vc.u32 %v722, %v718
        %v725 = vsel %vm724, 1, 0
        %v726 = vadd.s32 %v722, %v718
        %v727 = vadd.s32 %v723, %v725
        %v728 = vadd.s32 %v727, %v717
        %v729 = vadd.s32 %v728, %v719
        %v730 = vmul.u32 %v685, %v676
        %v731 = vadd.s32 %v707, %v726
        %vm732 = vc.u32 %v707, %v726
        %v733 = vadd.s32 %v729, 1
        %v734 = vsel %vm732, %v733, %v729
        %v735 = vadd.s32 %v730, %v734
        %v736 = vadd.s32 %v735, 536870912
        %v737 = vshrl.u32 %v736, 30
        %v738 = vshll.u32 %v737, 30
        %v739 = vsub.s32 %v735, %v738
        %vm740 = vcmp.lt.s32.totalorder %v739, 0
        %v741 = vsub.s32 0, %v739
        %v742 = vsel %vm740, %v741, %v739
        %v743 = vclz %v742
        %v744 = vsub.s32 %v743, 2
        %vm745 = vcmp.gt.s32.totalorder 0, %v744
        %v746 = vsel %vm745, 0, %v744
        %v747 = vsub.s32 32, %v746
        %v748 = vshll.u32 %v739, %v746
        %v749 = vshrl.u32 %v731, %v747
        %v750 = vor.u32 %v748, %v749
        %v751 = vsub.s32 4294967266, %v746
        %v752 = vadd.s32 %v751, 127
        %v753 = vshll.u32 %v752, 23
        %v754 = vor.u32 4788187, %v753
        %v755 = vand.u32 2147483647, %v754
        %v757 = vcvt.s32.f32 %v750
        %v758 = vmul.f32 %v757, %v755
        %v759 = vxor.u32 %v758, 2147483648
        %v760 = vsel %vm639, %v759, %v758
        %v761 = vsub.s32 4, %v737
        %v762 = vsel %vm639, %v761, %v737
        %v763 = vsel %vm638, %v171, %v760
        %v764 = vsel %vm638, 0, %v762
        %v765 = vmul.f32 %v763, %v763
        %v766 = vmul.f32 %v765, -0.001358992
        %v767 = vadd.f32 %v766, 0.041655596
        %v768 = vmul.f32 %v765, %v767
        %v769 = vadd.f32 %v768, -0.4999988
        %v770 = vmul.f32 %v765, %v769
        %v771 = vadd.f32 1.0, %v770
        %v772 = vmul.f32 %v763, %v763
        %v773 = vmul.f32 %v772, -0.00019511016
        %v774 = vadd.f32 %v773, 0.008332121
        %v775 = vmul.f32 %v772, %v774
        %v776 = vadd.f32 %v775, -0.16666654
        %v777 = vmul.f32 %v772, %v776
        %v778 = vadd.f32 %v777, 1.0
        %v779 = vmul.f32 %v778, %v763
        %vm780 = vweird.f32 %v171
        %v781 = vadd.s32 %v764, 3
        %v782 = vand.u32 %v781, 3
        %vm783 = vcmp.lt.s32.totalorder %v782, 2
        %vm784 = vcmp.eq.s32.totalorder %v782, 0
        %v785 = vxor.u32 %v779, 2147483648
        %v786 = vsel %vm784, %v771, %v785
        %vm787 = vcmp.eq.s32.totalorder %v782, 2
        %v788 = vxor.u32 %v771, 2147483648
        %v789 = vsel %vm787, %v788, %v779
        %v790 = vsel %vm783, %v786, %v789
        %v791 = vsel %vm780, nan, %v790
        %792 = vst [vmem:[%s147] sm:$0xff] %v636
        %793 = vst [vmem:[%s147 + $0x8] sm:$0xff] %v791
        %s794 = sand.u32 %s50, 1
        %s795 = scalar_lea.sflag [#allocation4], %s794
        %s796 = sand.u32 %s50, 1
        %s797 = smul.addr %s796, 16
        %s798 = scalar_lea.vmem [#allocation5], %s797
        %s799 = sand.u32 %s76, 1
        %s800 = scalar_lea.sflag [#allocation7], %s799
        %s801 = sand.u32 %s76, 1
        %s802 = smul.addr %s801, 16
        %s803 = scalar_lea.vmem [#allocation6], %s802
        // Predicated region
        $region29: #{tpu_custom_call.1} parent=23 // pred_check
          %p804 = pneg %p60
        $region30: #{tpu_custom_call.1} parent=23 // pred_check_branch
          %806 = sbr.rel (%p804) target = $region32
        $region31: #{tpu_custom_call.1} parent=23 // pred_region
          %s807 = smul.u32 2, %s21
          %809 = vsyncadd %s795, 0
          %s810 = smul.addr %s807, 8
          %s811 = scalar_lea.hbm %s1, %s810
          %s812 = sshll.u32 %s798, 4
          %s813 = int_to_ptr.vmem [resolvable:$true] %s812
          %s814 = sshll.u32 %s811, 4
          %s815 = int_to_ptr.hbm [resolvable:$true] %s814
          %820 = dma.vmem_to_hbm [thread:$0]  %s813, 256, %s815, %s795, 128, 128, 8
        $region32: #{tpu_custom_call.1} parent=23 // pred_fallthru
          _
        // Predicated region
        $region33: #{tpu_custom_call.1} parent=23 // pred_check
          %p821 = pneg %p86
        $region34: #{tpu_custom_call.1} parent=23 // pred_check_branch
          %823 = sbr.rel (%p821) target = $region36
        $region35: #{tpu_custom_call.1} parent=23 // pred_region
          %s824 = smul.u32 2, %s21
          %826 = vsyncadd %s800, 0
          %s827 = smul.addr %s824, 8
          %s828 = scalar_lea.hbm %s2, %s827
          %s829 = sshll.u32 %s803, 4
          %s830 = int_to_ptr.vmem [resolvable:$true] %s829
          %s831 = sshll.u32 %s828, 4
          %s832 = int_to_ptr.hbm [resolvable:$true] %s831
          %837 = dma.vmem_to_hbm [thread:$0]  %s830, 256, %s832, %s800, 128, 128, 8
        $region36: #{tpu_custom_call.1} parent=23 // pred_fallthru
          _
      $region24: #{tpu_custom_call.1} parent=5 // pred_fallthru
        _
      %p838 = scmp.le.s32.totalorder 2, %s16
      // Predicated region
      $region37: #{tpu_custom_call.1} parent=5 // pred_check
        %p839 = pneg %p838
      $region38: #{tpu_custom_call.1} parent=5 // pred_check_branch
        %841 = sbr.rel (%p839) target = $region40
      $region39: #{tpu_custom_call.1} parent=5 // pred_region
        %s842 = ssub.s32 %s16, 2
        // Predicated region
        $region41: #{tpu_custom_call.1} parent=39 // pred_check
          %p843 = pneg %p66
        $region42: #{tpu_custom_call.1} parent=39 // pred_check_branch
          %845 = sbr.rel (%p843) target = $region44
        $region43: #{tpu_custom_call.1} parent=39 // pred_region
          %s846 = sand.u32 %s51, 1
          %s847 = scalar_lea.sflag [#allocation4], %s846
          %s848 = sand.u32 %s51, 1
          %s849 = smul.addr %s848, 16
          %s850 = scalar_lea.vmem [#allocation5], %s849
          %852 = dma.done %s847, 256
        $region44: #{tpu_custom_call.1} parent=39 // pred_fallthru
          _
        // Predicated region
        $region45: #{tpu_custom_call.1} parent=39 // pred_check
          %p853 = pneg %p92
        $region46: #{tpu_custom_call.1} parent=39 // pred_check_branch
          %855 = sbr.rel (%p853) target = $region48
        $region47: #{tpu_custom_call.1} parent=39 // pred_region
          %s856 = sand.u32 %s77, 1
          %s857 = scalar_lea.sflag [#allocation7], %s856
          %s858 = sand.u32 %s77, 1
          %s859 = smul.addr %s858, 16
          %s860 = scalar_lea.vmem [#allocation6], %s859
          %862 = dma.done %s857, 256
        $region48: #{tpu_custom_call.1} parent=39 // pred_fallthru
          _
      $region40: #{tpu_custom_call.1} parent=5 // pred_fallthru
        _
    $region6: #{tpu_custom_call.1} parent=1 // loop_footer
      %s20 = sadd.s32 1, %s16
    $region7: #{tpu_custom_call.1} parent=1 // loop_footer_branch
      %15 = sbr.rel target = $region3
    $region8: #{tpu_custom_call.1} parent=1 // loop_exit
      _
    %863 = vsyncpa [#allocation3], 1
    %s864 = scalar_lea.sflag [#allocation3], 1
    %865 = vsyncpa %s864, 1
    %866 = vsyncpa [#allocation4], 1
    %s867 = scalar_lea.sflag [#allocation4], 1
    %868 = vsyncpa %s867, 1
    %869 = vsyncpa [#allocation7], 1
    %s870 = scalar_lea.sflag [#allocation7], 1
    %871 = vsyncpa %s870, 1

</llo_original>
